<compile_context>
chip_gen: v6e
topology: v6e:2x2x1
jax: 0.10.0
libtpu: 0.0.40
codegen_flags: <defaults>
</compile_context>

<pallas_src>
import functools

import jax
import jax.numpy as jnp
from jax.experimental import pallas as pl
from jax.experimental.pallas import tpu as pltpu

ALPHA = 0.25
GAMMA = 2.0  # realized as an explicit square below

LANES = 128
MAX_BLOCK_ROWS = 1024  # (1024,128) f32 = 512 KiB per buffer; safe on all gens


def _round_up(a, b):
    return ((a + b - 1) // b) * b


def _cdiv(a, b):
    return (a + b - 1) // b


def _focal_values(x_raw, t_raw):
    """Element-wise focal loss on one VMEM tile (f32 compute, hard 0/1 targets).

    Algebraic fold (valid for t in {0,1}):
      s    = (1 - 2t) * x
      bce  = softplus(s) = max(s, 0) + log1p(exp(-|s|))      (== BCEWithLogits)
      1-pt = sigmoid(s)            (since pt = exp(-bce) = sigmoid(-s))
    """
    x = x_raw.astype(jnp.float32)
    t = t_raw.astype(jnp.float32)

    s = x - (t + t) * x                        # (1 - 2t) * x
    z = jnp.exp(-jnp.abs(s))                   # EUP
    bce = jnp.maximum(s, 0.0) + jnp.log1p(z)   # stable softplus(s)
    r = pl.reciprocal(1.0 + z, approx=False)   # EUP reciprocal, no VALU divide
    q = jnp.where(s >= 0.0, r, z * r)          # sigmoid(s) == 1 - pt
    alpha_t = jnp.where(t == 1.0, ALPHA, 1.0 - ALPHA)
    return alpha_t * (q * q) * bce             # gamma == 2 -> explicit square


def _focal_sum_kernel(x_ref, t_ref, psum_ref, *, last_block_rows):
    """Per-block (8,128) partial sums; no element-wise HBM writeback.

    `last_block_rows` is a static Python int (or None) giving the number of
    valid rows in the final (partial) block; masking code is only emitted when
    it is not None, and only *executed* on the last grid step.
    """
    fl = _focal_values(x_ref[...], t_ref[...])
    blk, lanes = fl.shape

    def _write(vals):
        # Tile-preserving reshape -> plain vreg adds (no XLU, no VMEM copy).
        psum_ref[...] = jnp.sum(vals.reshape(blk // 8, 8, lanes), axis=0)

    if last_block_rows is None:
        _write(fl)
    else:
        pid = pl.program_id(0)
        last = pl.num_programs(0) - 1

        @pl.when(pid == last)
        def _():
            row = jax.lax.broadcasted_iota(jnp.int32, fl.shape, 0)
            _write(jnp.where(row < last_block_rows, fl, 0.0))

        @pl.when(pid < last)
        def _():
            _write(fl)


def _focal_elem_kernel(x_ref, t_ref, fl_ref):
    # Garbage rows in a partial last block are simply dropped on writeback.
    fl_ref[...] = _focal_values(x_ref[...], t_ref[...]).astype(fl_ref.dtype)


def _ref_focal_elements(inputs, targets):
    """Torch-faithful element-wise focal loss (pure jnp); also the tail path."""
    x = inputs.astype(jnp.float32)
    t = targets.astype(jnp.float32)
    bce = jnp.maximum(x, 0.0) - x * t + jnp.log1p(jnp.exp(-jnp.abs(x)))
    pt = jnp.exp(-bce)
    alpha_t = jnp.where(t.astype(jnp.int32) == 1, ALPHA, 1.0 - ALPHA)
    return alpha_t * (1.0 - pt) ** GAMMA * bce


def _ref_focal_loss(inputs, targets, reduce=True):
    fl = _ref_focal_elements(inputs, targets)
    return jnp.mean(fl) if reduce else fl


def focal_loss(inputs, targets, reduce=True, block_rows=MAX_BLOCK_ROWS):
    """Pallas implementation of FocalLoss.forward (alpha=0.25, gamma=2)."""
    orig_shape = inputs.shape
    total = inputs.size

    x_flat = inputs.reshape(-1)
    t_flat = targets.reshape(-1)

    rows = total // LANES               # complete 128-lane rows
    rem = total - rows * LANES          # sub-row tail (< 128 elems) -> jnp

    if rows == 0:
        # Tiny input: not worth a kernel launch.
        fl = _ref_focal_elements(x_flat, t_flat)
        if reduce:
            return jnp.mean(fl)
        return fl.reshape(orig_shape).astype(inputs.dtype)

    main_total = rows * LANES
    # No jnp.pad: lane-aligned shapes reshape for free; otherwise the kernel
    # runs on the aligned prefix and the <128-element tail is folded in jnp.
    x_main = (x_flat if rem == 0 else x_flat[:main_total]).reshape(rows, LANES)
    t_main = (t_flat if rem == 0 else t_flat[:main_total]).reshape(rows, LANES)

    blk = min(_round_up(block_rows, 8), _round_up(rows, 8))
    num_blocks = _cdiv(rows, blk)
    ragged_blocks = (rows % blk) != 0
    last_block_rows = rows - (num_blocks - 1) * blk  # valid rows in last block

    grid = (num_blocks,)
    in_specs = [
        pl.BlockSpec((blk, LANES), lambda i: (i, 0)),
        pl.BlockSpec((blk, LANES), lambda i: (i, 0)),
    ]
    cparams = pltpu.CompilerParams(dimension_semantics=("parallel",))

    if reduce:
        partials = pl.pallas_call(
            functools.partial(
                _focal_sum_kernel,
                last_block_rows=(last_block_rows if ragged_blocks else None),
            ),
            out_shape=jax.ShapeDtypeStruct((num_blocks * 8, LANES), jnp.float32),
            grid_spec=pltpu.PrefetchScalarGridSpec(
                num_scalar_prefetch=0,
                grid=grid,
                in_specs=in_specs,
                out_specs=pl.BlockSpec((8, LANES), lambda i: (i, 0)),
            ),
            compiler_params=cparams,
        )(x_main, t_main)
        loss_sum = jnp.sum(partials)
        if rem != 0:
            loss_sum = loss_sum + jnp.sum(
                _ref_focal_elements(x_flat[main_total:], t_flat[main_total:])
            )
        return loss_sum / jnp.float32(total)

    out_dtype = inputs.dtype  # output dtype follows the input
    fl_main = pl.pallas_call(
        _focal_elem_kernel,
        out_shape=jax.ShapeDtypeStruct((rows, LANES), out_dtype),
        grid_spec=pltpu.PrefetchScalarGridSpec(
            num_scalar_prefetch=0,
            grid=grid,
            in_specs=in_specs,
            out_specs=pl.BlockSpec((blk, LANES), lambda i: (i, 0)),
        ),
        compiler_params=cparams,
    )(x_main, t_main)
    if rem == 0:
        return fl_main.reshape(orig_shape)  # no post-slice copy
    fl_tail = _ref_focal_elements(
        x_flat[main_total:], t_flat[main_total:]
    ).astype(out_dtype)
    return jnp.concatenate([fl_main.reshape(-1), fl_tail]).reshape(orig_shape)


if __name__ == "__main__":
    key = jax.random.PRNGKey(0)
    k1, k2, k3, k4 = jax.random.split(key, 4)

    # NCHW-shaped logits/targets, as the module would see from a conv head.
    B, C, H, W = 2, 4, 16, 16
    inputs = jax.random.normal(k1, (B, C, H, W), dtype=jnp.float32)
    targets = (jax.random.uniform(k2, (B, C, H, W)) > 0.8).astype(jnp.float32)

    out = jax.block_until_ready(focal_loss(inputs, targets, reduce=True))
    ref = _ref_focal_loss(inputs, targets, reduce=True)
    assert jnp.allclose(out, ref, rtol=1e-5, atol=1e-6), (out, ref)

    # Narrow-dtype targets (bf16 0/1) — same result, less HBM traffic.
    out_bf = jax.block_until_ready(
        focal_loss(inputs, targets.astype(jnp.bfloat16), reduce=True)
    )
    assert jnp.allclose(out_bf, ref, rtol=1e-5, atol=1e-6), (out_bf, ref)

    # Non-reduced (element-wise) path, lane-aligned (no tail, no slice).
    fl = jax.block_until_ready(focal_loss(inputs, targets, reduce=False))
    fl_ref = _ref_focal_loss(inputs, targets, reduce=False)
    assert jnp.allclose(fl, fl_ref, rtol=1e-5, atol=1e-6)

    # Ragged size: multi-block grid + partial last block + sub-row jnp tail.
    x2 = jax.random.normal(k3, (3, 5, 17, 13), dtype=jnp.float32)
    t2 = (jax.random.uniform(k4, (3, 5, 17, 13)) > 0.7).astype(jnp.float32)
    out2 = jax.block_until_ready(focal_loss(x2, t2, reduce=True, block_rows=8))
    ref2 = _ref_focal_loss(x2, t2, reduce=True)
    assert jnp.allclose(out2, ref2, rtol=1e-5, atol=1e-6), (out2, ref2)

    # Ragged, default block size (single partial block), element-wise path.
    fl2 = jax.block_until_ready(focal_loss(x2, t2, reduce=False))
    fl2_ref = _ref_focal_loss(x2, t2, reduce=False)
    assert jnp.allclose(fl2, fl2_ref, rtol=1e-5, atol=1e-6)

    print("KERNEL_OK")
</pallas_src>

<mosaic_0001>
module attributes {stable_mosaic.version = 11 : i64} {
  func.func @_focal_sum_kernel(%arg0: i32, %arg1: memref<16x128xf32, #tpu.memory_space<vmem>>, %arg2: memref<16x128xf32, #tpu.memory_space<vmem>>, %arg3: memref<8x128xf32, #tpu.memory_space<vmem>>) attributes {dimension_semantics = [#tpu.dimension_semantics<parallel>], iteration_bounds = array<i64: 1>, scalar_prefetch = 0 : i64, scratch_operands = 0 : i64, tpu.core_type = #tpu.core_type<tc>, window_params = [{transform_indices = @transform_0, window_bounds = array<i64: 16, 128>}, {transform_indices = @transform_1, window_bounds = array<i64: 16, 128>}, {transform_indices = @transform_2, window_bounds = array<i64: 8, 128>}]} {
    %c0 = arith.constant 0 : index
    %c0_0 = arith.constant 0 : index
    %0 = vector.load %arg1[%c0, %c0_0] : memref<16x128xf32, #tpu.memory_space<vmem>>, vector<16x128xf32>
    %c0_1 = arith.constant 0 : index
    %c0_2 = arith.constant 0 : index
    %1 = vector.load %arg2[%c0_1, %c0_2] : memref<16x128xf32, #tpu.memory_space<vmem>>, vector<16x128xf32>
    %2 = arith.addf %1, %1 : vector<16x128xf32>
    %3 = arith.mulf %2, %0 : vector<16x128xf32>
    %4 = arith.subf %0, %3 : vector<16x128xf32>
    %5 = math.absf %4 : vector<16x128xf32>
    %cst = arith.constant 0.000000e+00 : f32
    %6 = vector.broadcast %cst : f32 to vector<16x128xf32>
    %7 = arith.subf %6, %5 : vector<16x128xf32>
    %8 = math.exp %7 : vector<16x128xf32>
    %cst_3 = arith.constant 0.000000e+00 : f32
    %9 = vector.broadcast %cst_3 : f32 to vector<16x128xf32>
    %10 = arith.maximumf %4, %9 : vector<16x128xf32>
    %11 = math.log1p %8 : vector<16x128xf32>
    %12 = arith.addf %10, %11 : vector<16x128xf32>
    %cst_4 = arith.constant 1.000000e+00 : f32
    %13 = vector.broadcast %cst_4 : f32 to vector<16x128xf32>
    %14 = arith.addf %13, %8 : vector<16x128xf32>
    %15 = tpu.reciprocal %14 : vector<16x128xf32> -> vector<16x128xf32>
    %cst_5 = arith.constant 0.000000e+00 : f32
    %16 = vector.broadcast %cst_5 : f32 to vector<16x128xf32>
    %17 = arith.cmpf oge, %4, %16 : vector<16x128xf32>
    %18 = arith.mulf %8, %15 : vector<16x128xf32>
    %19 = arith.select %17, %15, %18 : vector<16x128xi1>, vector<16x128xf32>
    %cst_6 = arith.constant 1.000000e+00 : f32
    %20 = vector.broadcast %cst_6 : f32 to vector<16x128xf32>
    %21 = arith.cmpf oeq, %1, %20 : vector<16x128xf32>
    %cst_7 = arith.constant 2.500000e-01 : f32
    %cst_8 = arith.constant 7.500000e-01 : f32
    %22 = vector.broadcast %cst_7 : f32 to vector<16x128xf32>
    %23 = vector.broadcast %cst_8 : f32 to vector<16x128xf32>
    %24 = arith.select %21, %22, %23 : vector<16x128xi1>, vector<16x128xf32>
    %25 = arith.mulf %19, %19 : vector<16x128xf32>
    %26 = arith.mulf %24, %25 : vector<16x128xf32>
    %27 = arith.mulf %26, %12 : vector<16x128xf32>
    %28 = vector.shape_cast %27 : vector<16x128xf32> to vector<2x8x128xf32>
    %cst_9 = arith.constant dense<0.000000e+00> : vector<8x128xf32>
    %29 = vector.multi_reduction <add>, %28, %cst_9 [0] : vector<2x8x128xf32> to vector<8x128xf32>
    %c0_10 = arith.constant 0 : index
    %c0_11 = arith.constant 0 : index
    %30 = vector.load %arg3[%c0_10, %c0_11] : memref<8x128xf32, #tpu.memory_space<vmem>>, vector<8x128xf32>
    tpu.vector_store %arg3[%c0_10, %c0_11], %29 {strides = array<i32>} : memref<8x128xf32, #tpu.memory_space<vmem>>, vector<8x128xf32>,
    return
  }
  func.func @transform_0(%arg0: i32) -> (i32, i32) {
    %c0_i32 = arith.constant 0 : i32
    %c0_i32_0 = arith.constant 0 : i32
    return %arg0, %c0_i32 : i32, i32
  }
  func.func @transform_1(%arg0: i32) -> (i32, i32) {
    %c0_i32 = arith.constant 0 : i32
    %c0_i32_0 = arith.constant 0 : i32
    return %arg0, %c0_i32 : i32, i32
  }
  func.func @transform_2(%arg0: i32) -> (i32, i32) {
    %c0_i32 = arith.constant 0 : i32
    %c0_i32_0 = arith.constant 0 : i32
    return %arg0, %c0_i32 : i32, i32
  }
}

</mosaic_0001>

<llo_original>
// kernel: tpu_custom_call.1
$region0: #{tpu_custom_call.1}
  #allocation0 [shape = 'u32[]', space=smem, size = 0x4, offset = 0x4, fixed_abs, tag = 'smem constant byte address 0x4 - core index']
  #allocation1 [shape = 'u32[144,128]{1,0:T(1,128)}', space=vmem, size = 0x12000, scoped, tag = 'internal scratch']
  %s0 = inlined_call_operand.hbm [shape: f32[16,128], index: 0, kind: input, shape index: {}]
  %s1 = inlined_call_operand.hbm [shape: f32[16,128], index: 1, kind: input, shape index: {}]
  %s2 = inlined_call_operand.hbm [shape: f32[8,128], index: 2, kind: output, shape index: {}]
  %s3 = sld [smem:[#allocation0]]
  $region26: #{tpu_custom_call.1} parent=0
    _
  %s5 = ssub.s32 1, %s3
  %s6 = scalar_select 0, %s5, %s3
  $region1: #{tpu_custom_call.1} parent=0
    #allocation2 [shape = 'u8[8192]{0}', space=vmem, size = 0x2000, scoped, tag = 'input window, operand 0, single buffered']
    #allocation3 [shape = 's32[1]{0}', space=sflag, size = 0x4, scoped, tag = 'scoped memory for tpu_custom_call.1']
    #allocation4 [shape = 's32[1]{0}', space=sflag, size = 0x4, scoped, tag = 'scoped memory for tpu_custom_call.1']
    #allocation5 [shape = 'u8[8192]{0}', space=vmem, size = 0x2000, scoped, tag = 'input window, operand 1, single buffered']
    #allocation6 [shape = 's32[1]{0}', space=sflag, size = 0x4, scoped, tag = 'scoped memory for tpu_custom_call.1']
    #allocation7 [shape = 'u8[4096]{0}', space=vmem, size = 0x1000, scoped, tag = 'output window, operand 0, single buffered']
    %7 = vsyncpa [#allocation3], 0
    %8 = vsyncpa [#allocation6], 0
    %9 = vsyncpa [#allocation4], 0
    // Predicated region
    $region2: #{tpu_custom_call.1} parent=1 // pred_check
      _
    $region3: #{tpu_custom_call.1} parent=1 // pred_check_branch
      %11 = sbr.rel (0) target = $region5
    $region4: #{tpu_custom_call.1} parent=1 // pred_region
      %s13 = ssub.s32 256, 256
      %14 = vsyncadd [#allocation3], %s13
      %s15 = sshll.u32 [#allocation2], 4
      %s16 = int_to_ptr.vmem [resolvable:$true] %s15
      %21 = dma.hbm_to_vmem [thread:$0]  %s0, 256, %s16, [#allocation3], 128, 128, 8
    $region5: #{tpu_custom_call.1} parent=1 // pred_fallthru
      _
    // Predicated region
    $region6: #{tpu_custom_call.1} parent=1 // pred_check
      _
    $region7: #{tpu_custom_call.1} parent=1 // pred_check_branch
      %23 = sbr.rel (0) target = $region9
    $region8: #{tpu_custom_call.1} parent=1 // pred_region
      %s25 = ssub.s32 256, 256
      %26 = vsyncadd [#allocation6], %s25
      %s27 = sshll.u32 [#allocation5], 4
      %s28 = int_to_ptr.vmem [resolvable:$true] %s27
      %33 = dma.hbm_to_vmem [thread:$0]  %s1, 256, %s28, [#allocation6], 128, 128, 8
    $region9: #{tpu_custom_call.1} parent=1 // pred_fallthru
      _
    // Predicated region
    $region10: #{tpu_custom_call.1} parent=1 // pred_check
      _
    $region11: #{tpu_custom_call.1} parent=1 // pred_check_branch
      %35 = sbr.rel (0) target = $region13
    $region12: #{tpu_custom_call.1} parent=1 // pred_region
      %36 = dma.done [#allocation3], 256
    $region13: #{tpu_custom_call.1} parent=1 // pred_fallthru
      _
    // Predicated region
    $region14: #{tpu_custom_call.1} parent=1 // pred_check
      _
    $region15: #{tpu_custom_call.1} parent=1 // pred_check_branch
      %38 = sbr.rel (0) target = $region17
    $region16: #{tpu_custom_call.1} parent=1 // pred_region
      %39 = dma.done [#allocation6], 256
    $region17: #{tpu_custom_call.1} parent=1 // pred_fallthru
      _
    %v40 = vld [vmem:[#allocation2] sm:$0xff]
    %v41 = vld [vmem:[#allocation2 + $0x8] sm:$0xff]
    %v42 = vld [vmem:[#allocation5] sm:$0xff]
    %v43 = vld [vmem:[#allocation5 + $0x8] sm:$0xff]
    %v44 = vadd.f32 %v42, %v42
    %v45 = vadd.f32 %v43, %v43
    %v46 = vmul.f32 %v44, %v40
    %v47 = vmul.f32 %v45, %v41
    %v48 = vsub.f32 %v40, %v46
    %v49 = vsub.f32 %v41, %v47
    %v50 = vand.u32 2147483647, %v48
    %v51 = vand.u32 2147483647, %v49
    %v52 = vsub.f32 0.0, %v50
    %v53 = vsub.f32 0.0, %v51
    %v54 = vmul.f32 %v52, 1.442695
    %v55 = vpow.pop %v54
    %v56 = vmul.f32 %v53, 1.442695
    %v57 = vpow.pop %v56
    %v58 = vmax.f32 %v48, 0.0
    %v59 = vmax.f32 %v49, 0.0
    %v60 = vadd.f32 %v55, 1.0
    %v61 = vlog2.pop %v60
    %v62 = vmul.f32 %v61, 0.6931472
    %v63 = vmul.f32 -0.5, %v55
    %v64 = vadd.f32 %v63, 1.0
    %v65 = vmul.f32 %v64, %v55
    %v66 = vand.u32 2147483647, %v55
    %vm67 = vcmp.lt.f32.partialorder %v66, 0.0004427343
    %v68 = vsel %vm67, %v65, %v62
    %v69 = vadd.f32 %v57, 1.0
    %v70 = vlog2.pop %v69
    %v71 = vmul.f32 %v70, 0.6931472
    %v72 = vmul.f32 -0.5, %v57
    %v73 = vadd.f32 %v72, 1.0
    %v74 = vmul.f32 %v73, %v57
    %v75 = vand.u32 2147483647, %v57
    %vm76 = vcmp.lt.f32.partialorder %v75, 0.0004427343
    %v77 = vsel %vm76, %v74, %v71
    %v78 = vadd.f32 %v58, %v68
    %v79 = vadd.f32 %v59, %v77
    %v80 = vadd.f32 %v55, 1.0
    %v81 = vadd.f32 %v57, 1.0
    %v82 = vrcp.pop %v80
    %v83 = vrcp.pop %v81
    %vm84 = vcmp.ge.f32.partialorder %v48, 0.0
    %vm85 = vcmp.ge.f32.partialorder %v49, 0.0
    %v86 = vmul.f32 %v55, %v82
    %v87 = vmul.f32 %v57, %v83
    %v88 = vsel %vm84, %v82, %v86
    %v89 = vsel %vm85, %v83, %v87
    %vm90 = vcmp.eq.f32.partialorder %v42, 1.0
    %vm91 = vcmp.eq.f32.partialorder %v43, 1.0
    %v92 = vsel %vm90, 0.25, 0.75
    %v93 = vsel %vm91, 0.25, 0.75
    %v94 = vmul.f32 %v88, %v88
    %v95 = vmul.f32 %v89, %v89
    %v96 = vmul.f32 %v92, %v94
    %v97 = vmul.f32 %v93, %v95
    %v98 = vmul.f32 %v96, %v78
    %v99 = vmul.f32 %v97, %v79
    %v100 = vadd.f32 %v98, %v99
    %101 = vst [vmem:[#allocation7] sm:$0xff] %v100
    // Predicated region
    $region18: #{tpu_custom_call.1} parent=1 // pred_check
      _
    $region19: #{tpu_custom_call.1} parent=1 // pred_check_branch
      %103 = sbr.rel (0) target = $region21
    $region20: #{tpu_custom_call.1} parent=1 // pred_region
      %s105 = ssub.s32 128, 128
      %106 = vsyncadd [#allocation4], %s105
      %s108 = sshll.u32 [#allocation7], 4
      %s109 = int_to_ptr.vmem [resolvable:$true] %s108
      %111 = dma.vmem_to_hbm [thread:$0]  %s109, 128, %s2, [#allocation4]
    $region21: #{tpu_custom_call.1} parent=1 // pred_fallthru
      _
    // Predicated region
    $region22: #{tpu_custom_call.1} parent=1 // pred_check
      _
    $region23: #{tpu_custom_call.1} parent=1 // pred_check_branch
      %113 = sbr.rel (0) target = $region25
    $region24: #{tpu_custom_call.1} parent=1 // pred_region
      %114 = dma.done [#allocation4], 128
    $region25: #{tpu_custom_call.1} parent=1 // pred_fallthru
      _
    %115 = vsyncpa [#allocation3], 1
    %116 = vsyncpa [#allocation6], 1
    %117 = vsyncpa [#allocation4], 1

</llo_original>
